<compile_context>
chip_gen: v5e
topology: v5e:2x2
jax: 0.10.0
libtpu: 0.0.40
codegen_flags: <defaults>
</compile_context>

<pallas_src>
import jax
import jax.numpy as jnp
from jax.experimental import pallas as pl
from jax.experimental.pallas import tpu as pltpu

EPS = 1e-5


def _ln_kernel(x_ref, w_ref, b_ref, o_ref):
    # x_ref block: (1, C, T).  T = spatial tile on the lane axis, C on sublanes.
    x = x_ref[0].astype(jnp.float32)               # (C, T)
    w = w_ref[...]                                 # (C, 1), pre-cast f32 in wrapper
    b = b_ref[...]                                 # (C, 1)

    inv_c = jnp.float32(1.0 / x.shape[0])
    # Centered (two-pass) moments: both passes hit VMEM-resident data only, so
    # this costs the same HBM traffic as the single-pass form but avoids the
    # E[x^2] - mu^2 cancellation when |mean| >> std (post-residual activations).
    mu = jnp.sum(x, axis=0, keepdims=True) * inv_c            # (1, T)
    xc = x - mu                                               # (C, T)
    var = jnp.sum(xc * xc, axis=0, keepdims=True) * inv_c     # (1, T), unbiased=False
    inv = jax.lax.rsqrt(var + EPS)                            # (1, T)

    o_ref[0] = (xc * inv * w + b).astype(o_ref.dtype)         # lane-dense writeback


def _round_down_128(n):
    return max(128, (n // 128) * 128)


def _vmem_capacity_bytes():
    try:
        return int(pltpu.get_tpu_info().vmem_capacity_bytes)
    except Exception:
        return 128 << 20                            # v5e/v6e default


def _tile_budget_bytes():
    """Per-buffer tile budget, generation-aware."""
    budget = 4 << 20                                # v6e/v7x: 4 MiB halves per-step tax
    try:
        kind = jax.devices()[0].device_kind.lower()
        if "v5 lite" in kind or "v5e" in kind or "v5lite" in kind:
            budget = 2 << 20                        # v5e: 2 MiB DMA ~2.5 us, overhead <15%
    except Exception:
        pass
    return budget


def _pick_tile_hw(hw, c, itemsize, budget_bytes, batch, min_total_steps=8):
    """Largest 128-multiple lane tile under the budget, but with enough grid steps."""
    if hw <= 128:
        # Sub-128 lanes => masked vst on writeback, but we cannot split further
        # without interleaving batch rows (not contiguous in NCHW).
        # TODO(synk): fold batch rows into the lane axis for tiny feature maps.
        return hw
    target = max(128, budget_bytes // max(1, c * itemsize))
    tile = _round_down_128(min(hw, target))
    # Guarantee a multi-step grid: keeps DMA/compute pipelined and lets the v7x
    # megacore shard work, even for deep stages with small H*W.
    if batch * pl.cdiv(hw, tile) < min_total_steps:
        want_tiles = -(-min_total_steps // batch)   # spatial tiles per batch row
        split = _round_down_128(-(-hw // want_tiles))
        tile = min(tile, split)
    return tile


def layernorm_pallas(x_nchw, weight, bias, tile_hw=None):
    """WithBias LayerNorm over channels of an NCHW tensor.

    x_nchw: (B, C, H, W); weight/bias: (C,).  Returns (B, C, H, W).
    Equivalent to to_3d -> WithBias_LayerNorm(C) -> to_4d, with no transposes.
    """
    B, C, H, W = x_nchw.shape
    hw = H * W
    itemsize = jnp.dtype(x_nchw.dtype).itemsize

    vmem_cap = _vmem_capacity_bytes()
    small_vmem = vmem_cap <= (64 << 20)             # v7x-class: 64 MiB per TC
    if tile_hw is None:
        tile_hw = _pick_tile_hw(hw, C, itemsize, _tile_budget_bytes(), B)

    # Shape-derived VMEM ask: in + out double-buffered (4x block) plus ~3x block
    # of f32 compiler temporaries (upcast, centered x, y), with headroom; capped
    # below physical VMEM per generation so a v6e-tuned tile can't OOM on v7x.
    block_bytes = C * tile_hw * itemsize
    temp_bytes = 3 * C * tile_hw * 4
    vmem_cap_limit = (48 << 20) if small_vmem else (64 << 20)
    vmem_limit = int(min(vmem_cap_limit,
                         max(16 << 20, 4 * block_bytes + temp_bytes + (2 << 20))))

    x3 = x_nchw.reshape(B, C, hw)                   # contiguous view: free, no transpose
    # Pre-cast affine params once in the wrapper; the kernel sees f32 directly
    # (avoids re-emitting a cast every grid step).
    w2 = weight.astype(jnp.float32).reshape(C, 1)
    b2 = bias.astype(jnp.float32).reshape(C, 1)

    grid = (B, pl.cdiv(hw, tile_hw))                # ragged last tile handled by Pallas

    out = pl.pallas_call(
        _ln_kernel,
        out_shape=jax.ShapeDtypeStruct((B, C, hw), x_nchw.dtype),
        grid=grid,
        in_specs=[
            pl.BlockSpec((1, C, tile_hw), lambda b, i: (b, 0, i)),
            pl.BlockSpec((C, 1), lambda b, i: (0, 0)),
            pl.BlockSpec((C, 1), lambda b, i: (0, 0)),
        ],
        out_specs=pl.BlockSpec((1, C, tile_hw), lambda b, i: (b, 0, i)),
        compiler_params=pltpu.CompilerParams(
            # Both grid axes are independent pixels -> shard across v7x's 2 TCs.
            dimension_semantics=("parallel", "parallel"),
            vmem_limit_bytes=vmem_limit,
        ),
    )(x3, w2, b2)

    return out.reshape(B, C, H, W)


def layernorm_ref(x_nchw, weight, bias):
    """Pure-JAX reference: per-pixel LayerNorm over channels (matches PyTorch)."""
    x = x_nchw.astype(jnp.float32)
    mu = jnp.mean(x, axis=1, keepdims=True)
    var = jnp.mean((x - mu) ** 2, axis=1, keepdims=True)    # unbiased=False
    y = (x - mu) / jnp.sqrt(var + EPS)
    y = y * weight.reshape(1, -1, 1, 1) + bias.reshape(1, -1, 1, 1)
    return y.astype(x_nchw.dtype)


if __name__ == "__main__":
    key = jax.random.PRNGKey(0)
    kx, kw, kb, kx2 = jax.random.split(key, 4)

    # Shapes consistent with the Restormer usage: NCHW, LN over C at each pixel.
    B, C, H, W = 2, 4, 16, 16
    x = jax.random.normal(kx, (B, C, H, W), dtype=jnp.float32)
    # Deterministic non-trivial affine params to exercise weight/bias paths.
    weight = 1.0 + 0.1 * jax.random.normal(kw, (C,), dtype=jnp.float32)
    bias = 0.1 * jax.random.normal(kb, (C,), dtype=jnp.float32)

    out = jax.block_until_ready(layernorm_pallas(x, weight, bias))
    ref = layernorm_ref(x, weight, bias)
    assert out.shape == (B, C, H, W)
    assert jnp.allclose(out, ref, atol=3e-5, rtol=1e-5), float(jnp.max(jnp.abs(out - ref)))

    # Ragged spatial extent: H*W = 144 is not a multiple of the 128-lane tile,
    # exercising the cdiv grid + partial edge block (masked writeback).
    B2, C2, H2, W2 = 2, 4, 12, 12
    x2 = jax.random.normal(kx2, (B2, C2, H2, W2), dtype=jnp.float32)
    out2 = jax.block_until_ready(layernorm_pallas(x2, weight, bias, tile_hw=128))
    ref2 = layernorm_ref(x2, weight, bias)
    assert jnp.allclose(out2, ref2, atol=3e-5, rtol=1e-5)

    print("KERNEL_OK")
</pallas_src>

<mosaic_0001>
module attributes {stable_mosaic.version = 11 : i64} {
  func.func @_ln_kernel(%arg0: i32, %arg1: i32, %arg2: memref<1x4x128xf32, #tpu.memory_space<vmem>>, %arg3: memref<4x1xf32, #tpu.memory_space<vmem>>, %arg4: memref<4x1xf32, #tpu.memory_space<vmem>>, %arg5: memref<1x4x128xf32, #tpu.memory_space<vmem>>) attributes {dimension_semantics = [#tpu.dimension_semantics<parallel>, #tpu.dimension_semantics<parallel>], iteration_bounds = array<i64: 2, 2>, scalar_prefetch = 0 : i64, scratch_operands = 0 : i64, tpu.core_type = #tpu.core_type<tc>, window_params = [{transform_indices = @transform_0, window_bounds = array<i64: 1, 4, 128>}, {pipeline_mode = #tpu.pipeline_mode<synchronous>, transform_indices = @transform_1, window_bounds = array<i64: 4, 1>}, {pipeline_mode = #tpu.pipeline_mode<synchronous>, transform_indices = @transform_2, window_bounds = array<i64: 4, 1>}, {transform_indices = @transform_3, window_bounds = array<i64: 1, 4, 128>}]} {
    %c0 = arith.constant 0 : index
    %c0_0 = arith.constant 0 : index
    %c0_1 = arith.constant 0 : index
    %0 = vector.load %arg2[%c0, %c0_0, %c0_1] : memref<1x4x128xf32, #tpu.memory_space<vmem>>, vector<1x4x128xf32>
    %1 = vector.shape_cast %0 : vector<1x4x128xf32> to vector<4x128xf32>
    %c0_2 = arith.constant 0 : index
    %c0_3 = arith.constant 0 : index
    %2 = vector.load %arg3[%c0_2, %c0_3] : memref<4x1xf32, #tpu.memory_space<vmem>>, vector<4x1xf32>
    %c0_4 = arith.constant 0 : index
    %c0_5 = arith.constant 0 : index
    %3 = vector.load %arg4[%c0_4, %c0_5] : memref<4x1xf32, #tpu.memory_space<vmem>>, vector<4x1xf32>
    %cst = arith.constant dense<0.000000e+00> : vector<128xf32>
    %4 = vector.multi_reduction <add>, %1, %cst [0] : vector<4x128xf32> to vector<128xf32>
    %5 = vector.shape_cast %4 : vector<128xf32> to vector<1x128xf32>
    %cst_6 = arith.constant 2.500000e-01 : f32
    %6 = vector.broadcast %cst_6 : f32 to vector<1x128xf32>
    %7 = arith.mulf %5, %6 : vector<1x128xf32>
    %8 = vector.broadcast %7 : vector<1x128xf32> to vector<4x128xf32>
    %9 = arith.subf %1, %8 : vector<4x128xf32>
    %10 = arith.mulf %9, %9 : vector<4x128xf32>
    %cst_7 = arith.constant dense<0.000000e+00> : vector<128xf32>
    %11 = vector.multi_reduction <add>, %10, %cst_7 [0] : vector<4x128xf32> to vector<128xf32>
    %12 = vector.shape_cast %11 : vector<128xf32> to vector<1x128xf32>
    %cst_8 = arith.constant 2.500000e-01 : f32
    %13 = vector.broadcast %cst_8 : f32 to vector<1x128xf32>
    %14 = arith.mulf %12, %13 : vector<1x128xf32>
    %cst_9 = arith.constant 9.99999974E-6 : f32
    %15 = vector.broadcast %cst_9 : f32 to vector<1x128xf32>
    %16 = arith.addf %14, %15 : vector<1x128xf32>
    %17 = math.rsqrt %16 : vector<1x128xf32>
    %18 = vector.broadcast %17 : vector<1x128xf32> to vector<4x128xf32>
    %19 = arith.mulf %9, %18 : vector<4x128xf32>
    %20 = vector.broadcast %2 : vector<4x1xf32> to vector<4x128xf32>
    %21 = arith.mulf %19, %20 : vector<4x128xf32>
    %22 = vector.broadcast %3 : vector<4x1xf32> to vector<4x128xf32>
    %23 = arith.addf %21, %22 : vector<4x128xf32>
    %c0_10 = arith.constant 0 : index
    %c0_11 = arith.constant 0 : index
    %c0_12 = arith.constant 0 : index
    %24 = vector.load %arg5[%c0_10, %c0_11, %c0_12] : memref<1x4x128xf32, #tpu.memory_space<vmem>>, vector<1x4x128xf32>
    %25 = vector.shape_cast %24 : vector<1x4x128xf32> to vector<4x128xf32>
    %26 = vector.shape_cast %23 : vector<4x128xf32> to vector<1x4x128xf32>
    tpu.vector_store %arg5[%c0_10, %c0_11, %c0_12], %26 {strides = array<i32>} : memref<1x4x128xf32, #tpu.memory_space<vmem>>, vector<1x4x128xf32>,
    return
  }
  func.func @transform_0(%arg0: i32, %arg1: i32) -> (i32, i32, i32) {
    %c0_i32 = arith.constant 0 : i32
    %c0_i32_0 = arith.constant 0 : i32
    return %arg0, %c0_i32, %arg1 : i32, i32, i32
  }
  func.func @transform_1(%arg0: i32, %arg1: i32) -> (i32, i32) {
    %c0_i32 = arith.constant 0 : i32
    %c0_i32_0 = arith.constant 0 : i32
    %c0_i32_1 = arith.constant 0 : i32
    return %c0_i32, %c0_i32_0 : i32, i32
  }
  func.func @transform_2(%arg0: i32, %arg1: i32) -> (i32, i32) {
    %c0_i32 = arith.constant 0 : i32
    %c0_i32_0 = arith.constant 0 : i32
    %c0_i32_1 = arith.constant 0 : i32
    return %c0_i32, %c0_i32_0 : i32, i32
  }
  func.func @transform_3(%arg0: i32, %arg1: i32) -> (i32, i32, i32) {
    %c0_i32 = arith.constant 0 : i32
    %c0_i32_0 = arith.constant 0 : i32
    return %arg0, %c0_i32, %arg1 : i32, i32, i32
  }
}

</mosaic_0001>

<llo_original>
// kernel: tpu_custom_call.1
$region0: #{tpu_custom_call.1}
  #allocation0 [shape = 'u32[]', space=smem, size = 0x4, offset = 0x4, fixed_abs, tag = 'smem constant byte address 0x4 - core index']
  #allocation1 [shape = 'u32[72,128]{1,0:T(1,128)}', space=vmem, size = 0x9000, scoped, tag = 'internal scratch']
  %s0 = inlined_call_operand.hbm [shape: f32[2,4,256], index: 0, kind: input, shape index: {}]
  %s1 = inlined_call_operand.vmem [shape: f32[4,1], index: 1, kind: input, shape index: {}]
  %s2 = inlined_call_operand.vmem [shape: f32[4,1], index: 2, kind: input, shape index: {}]
  %s3 = inlined_call_operand.hbm [shape: f32[2,4,256], index: 3, kind: output, shape index: {}]
  %s4 = sld [smem:[#allocation0]]
  $region49: #{tpu_custom_call.1} parent=0
    _
  %s6 = ssub.s32 1, %s4
  %s7 = scalar_select 0, %s6, %s4
  $region1: #{tpu_custom_call.1} parent=0
    #allocation2 [shape = 'u8[4096]{0}', space=vmem, size = 0x1000, scoped, tag = 'input window, operand 0']
    #allocation3 [shape = 's32[2]{0}', space=sflag, size = 0x8, scoped, tag = 'scoped memory for tpu_custom_call.1']
    #allocation4 [shape = 's32[2]{0}', space=sflag, size = 0x8, scoped, tag = 'scoped memory for tpu_custom_call.1']
    #allocation5 [shape = 'u8[4096]{0}', space=vmem, size = 0x1000, scoped, tag = 'output window, operand 0']
    %8 = vsyncpa [#allocation3], 0
    %s9 = scalar_lea.sflag [#allocation3], 1
    %10 = vsyncpa %s9, 0
    %11 = vsyncpa [#allocation4], 0
    %s12 = scalar_lea.sflag [#allocation4], 1
    %13 = vsyncpa %s12, 0
    loop: start=0, step=1, limit=6
    $region2: #{tpu_custom_call.1} parent=1 // loop_pre_header
      _
    $region3: #{tpu_custom_call.1} parent=1 // loop_header
      %s15 = sphi 0, %s19
      %p16 = scmp.ge.s32.totalorder %s15, 6
      %s22 = sphi 0, %s34
      %s23 = sphi 0, %s30
      %s24 = sphi 0, %s22
      %s25 = sphi 0, %s23
      %s26 = sphi 0, %s24
      %s27 = sphi 0, %s25
      %s39 = sphi 0, %s41
      %s42 = sphi 0, %s39
      %s43 = sphi 0, %s42
      %s59 = sphi 0, %s43
      %s63 = sphi 0, %s63
      %s65 = sphi 0, %s63
      %s66 = sphi 0, %s65
      %s80 = sphi 0, %s66
      %s84 = sphi 0, %s84
      %s86 = sphi 0, %s84
      %s87 = sphi 0, %s86
      %s101 = sphi 0, %s87
      %s109 = sphi 0, %s111
      %s112 = sphi 0, %s109
      %s113 = sphi 0, %s112
      %s129 = sphi 0, %s113
    $region4: #{tpu_custom_call.1} parent=1 // loop_header_branch
      %18 = sbr.rel (%p16) target = $region8
    $region5: #{tpu_custom_call.1} parent=1 // loop_body
      %s20 = ssub.s32 %s15, 1
      %s21 = ssub.s32 %s15, 2
      %s28 = sadd.s32 1, %s23
      %p29 = scmp.ge.s32.totalorder %s28, 2
      %s30 = scalar_select %p29, 0, %s28
      %s31 = sadd.s32 1, %s22
      %s32 = scalar_select %p29, %s31, %s22
      %p33 = scmp.ge.s32.totalorder %s32, 2
      %s34 = scalar_select %p33, 0, %s32
      %s35 = ssub.s32 %s22, %s34
      %s36 = ssub.s32 %s23, %s30
      %s37 = sor.u32 %s35, %s36
      %p38 = scmp.eq.s32.totalorder %s37, 0
      %s40 = sadd.s32 %s39, 1
      %s41 = scalar_select %p38, %s39, %s40
      %p44 = pneg %p38
      %p45 = scmp.eq.s32.totalorder %s15, 3
      %p46 = por %p44, %p45
      %p47 = scmp.ne.s32.totalorder %s39, %s42
      %p48 = scmp.eq.s32.totalorder %s15, 0
      %p49 = por %p47, %p48
      %p50 = scmp.ne.s32.totalorder %s39, %s42
      %p51 = scmp.eq.s32.totalorder %s20, 3
      %p52 = por %p50, %p51
      %p53 = scmp.ne.s32.totalorder %s42, %s43
      %p54 = scmp.eq.s32.totalorder %s20, 0
      %p55 = por %p53, %p54
      %p56 = scmp.ne.s32.totalorder %s42, %s43
      %p57 = scmp.eq.s32.totalorder %s21, 3
      %p58 = por %p56, %p57
      %p60 = scmp.ne.s32.totalorder %s43, %s59
      %p61 = scmp.eq.s32.totalorder %s21, 0
      %p62 = por %p60, %p61
      %s64 = sadd.s32 %s63, 1
      %p67 = scmp.eq.s32.totalorder %s15, 3
      %p68 = scmp.ne.s32.totalorder %s63, %s65
      %p69 = scmp.eq.s32.totalorder %s15, 0
      %p70 = por %p68, %p69
      %p71 = scmp.ne.s32.totalorder %s63, %s65
      %p72 = scmp.eq.s32.totalorder %s20, 3
      %p73 = por %p71, %p72
      %p74 = scmp.ne.s32.totalorder %s65, %s66
      %p75 = scmp.eq.s32.totalorder %s20, 0
      %p76 = por %p74, %p75
      %p77 = scmp.ne.s32.totalorder %s65, %s66
      %p78 = scmp.eq.s32.totalorder %s21, 3
      %p79 = por %p77, %p78
      %p81 = scmp.ne.s32.totalorder %s66, %s80
      %p82 = scmp.eq.s32.totalorder %s21, 0
      %p83 = por %p81, %p82
      %s85 = sadd.s32 %s84, 1
      %p88 = scmp.eq.s32.totalorder %s15, 3
      %p89 = scmp.ne.s32.totalorder %s84, %s86
      %p90 = scmp.eq.s32.totalorder %s15, 0
      %p91 = por %p89, %p90
      %p92 = scmp.ne.s32.totalorder %s84, %s86
      %p93 = scmp.eq.s32.totalorder %s20, 3
      %p94 = por %p92, %p93
      %p95 = scmp.ne.s32.totalorder %s86, %s87
      %p96 = scmp.eq.s32.totalorder %s20, 0
      %p97 = por %p95, %p96
      %p98 = scmp.ne.s32.totalorder %s86, %s87
      %p99 = scmp.eq.s32.totalorder %s21, 3
      %p100 = por %p98, %p99
      %p102 = scmp.ne.s32.totalorder %s87, %s101
      %p103 = scmp.eq.s32.totalorder %s21, 0
      %p104 = por %p102, %p103
      %s105 = ssub.s32 %s22, %s34
      %s106 = ssub.s32 %s23, %s30
      %s107 = sor.u32 %s105, %s106
      %p108 = scmp.eq.s32.totalorder %s107, 0
      %s110 = sadd.s32 %s109, 1
      %s111 = scalar_select %p108, %s109, %s110
      %p114 = pneg %p108
      %p115 = scmp.eq.s32.totalorder %s15, 3
      %p116 = por %p114, %p115
      %p117 = scmp.ne.s32.totalorder %s109, %s112
      %p118 = scmp.eq.s32.totalorder %s15, 0
      %p119 = por %p117, %p118
      %p120 = scmp.ne.s32.totalorder %s109, %s112
      %p121 = scmp.eq.s32.totalorder %s20, 3
      %p122 = por %p120, %p121
      %p123 = scmp.ne.s32.totalorder %s112, %s113
      %p124 = scmp.eq.s32.totalorder %s20, 0
      %p125 = por %p123, %p124
      %p126 = scmp.ne.s32.totalorder %s112, %s113
      %p127 = scmp.eq.s32.totalorder %s21, 3
      %p128 = por %p126, %p127
      %p130 = scmp.ne.s32.totalorder %s113, %s129
      %p131 = scmp.eq.s32.totalorder %s21, 0
      %p132 = por %p130, %p131
      %p133 = scmp.le.s32.totalorder 1, %s15
      %p134 = scmp.lt.s32.totalorder %s15, 5
      %p135 = pnand %p133, %p134
      %p136 = pneg %p135
      // Predicated region
      $region9: #{tpu_custom_call.1} parent=5 // pred_check
        _
      $region10: #{tpu_custom_call.1} parent=5 // pred_check_branch
        %138 = sbr.rel (%p135) target = $region12
      $region11: #{tpu_custom_call.1} parent=5 // pred_region
        %s139 = ssub.s32 %s15, 1
        // Predicated region
        $region13: #{tpu_custom_call.1} parent=11 // pred_check
          %p140 = pneg %p76
        $region14: #{tpu_custom_call.1} parent=11 // pred_check_branch
          %142 = sbr.rel (%p140) target = $region16
        $region15: #{tpu_custom_call.1} parent=11 // pred_region
          _
        $region16: #{tpu_custom_call.1} parent=11 // pred_fallthru
          _
        // Predicated region
        $region17: #{tpu_custom_call.1} parent=11 // pred_check
          %p143 = pneg %p97
        $region18: #{tpu_custom_call.1} parent=11 // pred_check_branch
          %145 = sbr.rel (%p143) target = $region20
        $region19: #{tpu_custom_call.1} parent=11 // pred_region
          _
        $region20: #{tpu_custom_call.1} parent=11 // pred_fallthru
          _
      $region12: #{tpu_custom_call.1} parent=5 // pred_fallthru
        _
      %p146 = scmp.lt.s32.totalorder %s15, 4
      // Predicated region
      $region21: #{tpu_custom_call.1} parent=5 // pred_check
        %p147 = pneg %p146
      $region22: #{tpu_custom_call.1} parent=5 // pred_check_branch
        %149 = sbr.rel (%p147) target = $region24
      $region23: #{tpu_custom_call.1} parent=5 // pred_region
        // Predicated region
        $region25: #{tpu_custom_call.1} parent=23 // pred_check
          %p150 = pneg %p49
        $region26: #{tpu_custom_call.1} parent=23 // pred_check_branch
          %152 = sbr.rel (%p150) target = $region28
        $region27: #{tpu_custom_call.1} parent=23 // pred_region
          %s153 = sand.u32 %s39, 1
          %s154 = scalar_lea.sflag [#allocation3], %s153
          %s155 = sand.u32 %s39, 1
          %s156 = smul.addr %s155, 4
          %s157 = scalar_lea.vmem [#allocation2], %s156
          %159 = vsyncadd %s154, 0
          %s160 = smul.addr %s22, 2
          %s161 = sadd.s32 %s23, %s160
          %s162 = smul.addr %s161, 4
          %s163 = scalar_lea.hbm %s0, %s162
          %s165 = sshll.u32 %s163, 4
          %s166 = int_to_ptr.hbm [resolvable:$true] %s165
          %s167 = sshll.u32 %s157, 4
          %s168 = int_to_ptr.vmem [resolvable:$true] %s167
          %170 = dma.hbm_to_vmem [thread:$0]  %s166, 64, %s168, %s154
        $region28: #{tpu_custom_call.1} parent=23 // pred_fallthru
          _
      $region24: #{tpu_custom_call.1} parent=5 // pred_fallthru
        _
      %p171 = scmp.le.s32.totalorder 1, %s15
      %p172 = scmp.lt.s32.totalorder %s15, 5
      %p173 = pnand %p171, %p172
      %p174 = pneg %p173
      // Predicated region
      $region29: #{tpu_custom_call.1} parent=5 // pred_check
        _
      $region30: #{tpu_custom_call.1} parent=5 // pred_check_branch
        %176 = sbr.rel (%p173) target = $region32
      $region31: #{tpu_custom_call.1} parent=5 // pred_region
        %s177 = ssub.s32 %s15, 1
        %s178 = sand.u32 %s42, 1
        %s179 = scalar_lea.sflag [#allocation3], %s178
        %s180 = sand.u32 %s42, 1
        %s181 = smul.addr %s180, 4
        %s182 = scalar_lea.vmem [#allocation2], %s181
        // Predicated region
        $region33: #{tpu_custom_call.1} parent=31 // pred_check
          %p183 = pneg %p55
        $region34: #{tpu_custom_call.1} parent=31 // pred_check_branch
          %185 = sbr.rel (%p183) target = $region36
        $region35: #{tpu_custom_call.1} parent=31 // pred_region
          %187 = dma.done %s179, 64
        $region36: #{tpu_custom_call.1} parent=31 // pred_fallthru
          _
        %s188 = sand.u32 %s42, 1
        %s189 = scalar_lea.sflag [#allocation3], %s188
        %s190 = sand.u32 %s42, 1
        %s191 = smul.addr %s190, 4
        %s192 = scalar_lea.vmem [#allocation2], %s191
        %p193 = pneg %p55
        %p194 = pneg %p52
        %p195 = pneg %p76
        %p196 = pneg %p73
        %p197 = pneg %p97
        %p198 = pneg %p94
        %p199 = pneg %p125
        %p200 = pneg %p122
        %s201 = sand.u32 %s112, 1
        %s202 = scalar_lea.sflag [#allocation4], %s201
        %s203 = sand.u32 %s112, 1
        %s204 = smul.addr %s203, 4
        %s205 = scalar_lea.vmem [#allocation5], %s204
        %v206 = vld [vmem:[%s182] sm:$0xf]
        %v207 = vld [vmem:[%s1] sm:$0xf]
        %v208 = vld [vmem:[%s2] sm:$0xf]
        %vm209 = vcmask 1043456
        %v210 = vsel %vm209, %v206, 0.0
        %v211 = vrot.slane %v210, 4
        %v212 = vadd.f32 %v210, %v211
        %v213 = vrot.slane %v212, 2
        %v214 = vadd.f32 %v212, %v213
        %v215 = vrot.slane %v214, 1
        %v216 = vadd.f32 %v214, %v215
        %v217 = vmul.f32 %v216, 0.25
        %v218 = vsub.f32 %v206, %v217
        %v219 = vmul.f32 %v218, %v218
        %v220 = vsel %vm209, %v219, 0.0
        %v221 = vrot.slane %v220, 4
        %v222 = vadd.f32 %v220, %v221
        %v223 = vrot.slane %v222, 2
        %v224 = vadd.f32 %v222, %v223
        %v225 = vrot.slane %v224, 1
        %v226 = vadd.f32 %v224, %v225
        %v227 = vmul.f32 %v226, 0.25
        %v228 = vadd.f32 %v227, 1e-05
        %v229 = vrsqrt.pop %v228
        %v230 = vmul.f32 %v229, %v228
        %v231 = vmul.f32 %v230, %v229
        %v232 = vmul.f32 0.5, %v231
        %v233 = vsub.f32 1.5, %v232
        %v234 = vmul.f32 %v229, %v233
        %vm235 = vweird.f32 %v228
        %vm236 = vweird.f32 %v229
        %vm237 = vmor %vm235, %vm236
        %v238 = vsel %vm237, %v229, %v234
        %v239 = vmul.f32 %v218, %v238
        %241 = vset.pattern.permute.xlu0 0
        %242 = vperm.xlu0 %241, %v207
        %v243 = vpop.permute.xlu0 %242
        %v245 = vmul.f32 %v239, %v243
        %247 = vset.pattern.permute.xlu0 0
        %248 = vperm.xlu0 %247, %v208
        %v249 = vpop.permute.xlu0 %248
        %v251 = vadd.f32 %v245, %v249
        %252 = vst [vmem:[%s205] sm:$0xf] %v251
        %s253 = sand.u32 %s112, 1
        %s254 = scalar_lea.sflag [#allocation4], %s253
        %s255 = sand.u32 %s112, 1
        %s256 = smul.addr %s255, 4
        %s257 = scalar_lea.vmem [#allocation5], %s256
        // Predicated region
        $region37: #{tpu_custom_call.1} parent=31 // pred_check
          %p258 = pneg %p122
        $region38: #{tpu_custom_call.1} parent=31 // pred_check_branch
          %260 = sbr.rel (%p258) target = $region40
        $region39: #{tpu_custom_call.1} parent=31 // pred_region
          %262 = vsyncadd %s254, 0
          %s263 = smul.addr %s24, 2
          %s264 = sadd.s32 %s25, %s263
          %s265 = smul.addr %s264, 4
          %s266 = scalar_lea.hbm %s3, %s265
          %s268 = sshll.u32 %s257, 4
          %s269 = int_to_ptr.vmem [resolvable:$true] %s268
          %s270 = sshll.u32 %s266, 4
          %s271 = int_to_ptr.hbm [resolvable:$true] %s270
          %273 = dma.vmem_to_hbm [thread:$0]  %s269, 64, %s271, %s254
        $region40: #{tpu_custom_call.1} parent=31 // pred_fallthru
          _
      $region32: #{tpu_custom_call.1} parent=5 // pred_fallthru
        _
      %p274 = scmp.le.s32.totalorder 2, %s15
      // Predicated region
      $region41: #{tpu_custom_call.1} parent=5 // pred_check
        %p275 = pneg %p274
      $region42: #{tpu_custom_call.1} parent=5 // pred_check_branch
        %277 = sbr.rel (%p275) target = $region44
      $region43: #{tpu_custom_call.1} parent=5 // pred_region
        %s278 = ssub.s32 %s15, 2
        // Predicated region
        $region45: #{tpu_custom_call.1} parent=43 // pred_check
          %p279 = pneg %p128
        $region46: #{tpu_custom_call.1} parent=43 // pred_check_branch
          %281 = sbr.rel (%p279) target = $region48
        $region47: #{tpu_custom_call.1} parent=43 // pred_region
          %s282 = sand.u32 %s113, 1
          %s283 = scalar_lea.sflag [#allocation4], %s282
          %s284 = sand.u32 %s113, 1
          %s285 = smul.addr %s284, 4
          %s286 = scalar_lea.vmem [#allocation5], %s285
          %288 = dma.done %s283, 64
        $region48: #{tpu_custom_call.1} parent=43 // pred_fallthru
          _
      $region44: #{tpu_custom_call.1} parent=5 // pred_fallthru
        _
    $region6: #{tpu_custom_call.1} parent=1 // loop_footer
      %s19 = sadd.s32 1, %s15
    $region7: #{tpu_custom_call.1} parent=1 // loop_footer_branch
      %14 = sbr.rel target = $region3
    $region8: #{tpu_custom_call.1} parent=1 // loop_exit
      _
    %289 = vsyncpa [#allocation3], 1
    %s290 = scalar_lea.sflag [#allocation3], 1
    %291 = vsyncpa %s290, 1
    %292 = vsyncpa [#allocation4], 1
    %s293 = scalar_lea.sflag [#allocation4], 1
    %294 = vsyncpa %s293, 1

</llo_original>
